<compile_context>
chip_gen: v6e
topology: v6e:2x2x1
jax: 0.10.0
libtpu: 0.0.40
codegen_flags: <defaults>
</compile_context>

<pallas_src>
import math
import functools

import jax
import jax.numpy as jnp
from jax.experimental import pallas as pl
from jax.experimental.pallas import tpu as pltpu


def _add_pe_kernel(batch, valid_bd, x_ref, pe_ref, o_ref):
    """Pure 2-read / 1-write elementwise add.

    x_ref / o_ref : (TS, BD_pad) tiles of the lane-dense (S, B*D) slab.
    pe_ref        : (TS, D) tile of the precomputed sinusoidal table (f32).

    The (S, B*D) flattening puts feature index d = lane % D, so the table is
    replicated across the B lane groups (cheap lane concat, no transcendentals)
    and zero-padded up to the lane-aligned width before the add.
    """
    pe = pe_ref[...]                                         # (ts, D) f32
    if batch > 1:
        pe = jnp.concatenate([pe] * batch, axis=-1)          # (ts, B*D)
    pad = o_ref.shape[-1] - valid_bd
    if pad:
        pe = jnp.concatenate(
            [pe, jnp.zeros((pe.shape[0], pad), pe.dtype)], axis=-1)
    o_ref[...] = (x_ref[...].astype(jnp.float32) + pe).astype(o_ref.dtype)


def _pick_block_s(s, per_row_bytes, budget_bytes=3 << 20):
    """Multiple-of-8 row count fitting a conservative VMEM budget, with >= 2
    grid steps whenever S >= 16 so both v7x TensorCores get work."""
    if s <= 8:
        return s                                             # full-dim block is legal
    rows = max(8, (budget_bytes // max(per_row_bytes, 1)) // 8 * 8)
    if s >= 16:
        rows = min(rows, max(8, (s // 2) // 8 * 8))          # guarantee >= 2 steps
    return s if rows >= s else rows


def positional_encoding(x, *, max_len=2048, block_s=None):
    """x: (S, B, D).  Returns dropout_eval(x + pe[:S]) with sinusoidal pe."""
    S, B, D = x.shape
    if S > max_len:
        raise ValueError(f"sequence length {S} exceeds max_len={max_len}")
    if D % 2 != 0:
        raise ValueError("d_model must be even (matches the PyTorch module)")

    # --- Precompute the sinusoidal table (mirrors the module's buffer). -----
    position = jnp.arange(S, dtype=jnp.float32)[:, None]                 # (S, 1)
    div_term = jnp.exp(jnp.arange(0, D, 2, dtype=jnp.float32)
                       * (-math.log(10000.0) / D))                      # (D//2,)
    ang = position * div_term                                            # (S, D//2)
    pe = jnp.zeros((S, D), jnp.float32)
    pe = pe.at[:, 0::2].set(jnp.sin(ang))
    pe = pe.at[:, 1::2].set(jnp.cos(ang))

    # --- Lane-dense flattening + lane padding guard. ------------------------
    bd = B * D
    x2 = x.reshape(S, bd)                                    # contiguous, free reshape
    bd_pad = bd
    if bd % 128:
        bd_pad = ((bd + 127) // 128) * 128
        x2 = jnp.pad(x2, ((0, 0), (0, bd_pad - bd)))

    itemsize = jnp.dtype(x.dtype).itemsize
    per_row_bytes = 2 * bd_pad * itemsize + D * 4            # x + out + pe per row
    if block_s is None:
        block_s = _pick_block_s(S, per_row_bytes)
    grid = (pl.cdiv(S, block_s),)                            # ragged-safe

    cost = pl.CostEstimate(
        flops=S * bd,
        transcendentals=0,
        bytes_accessed=2 * S * bd * itemsize + S * D * 4)

    out = pl.pallas_call(
        functools.partial(_add_pe_kernel, B, bd),
        out_shape=jax.ShapeDtypeStruct((S, bd_pad), x.dtype),
        grid_spec=pltpu.PrefetchScalarGridSpec(
            num_scalar_prefetch=0,
            grid=grid,
            in_specs=[pl.BlockSpec((block_s, bd_pad), lambda s: (s, 0)),
                      pl.BlockSpec((block_s, D), lambda s: (s, 0))],
            out_specs=pl.BlockSpec((block_s, bd_pad), lambda s: (s, 0)),
        ),
        compiler_params=pltpu.CompilerParams(
            dimension_semantics=("parallel",)),
        cost_estimate=cost,
    )(x2, pe)

    if bd_pad != bd:
        out = out[:, :bd]
    return out.reshape(S, B, D)


def _reference(x, max_len=2048):
    """Pure-JAX reference mirroring the PyTorch module (eval mode)."""
    S, B, D = x.shape
    position = jnp.arange(max_len, dtype=jnp.float32)[:, None]
    div_term = jnp.exp(jnp.arange(0, D, 2, dtype=jnp.float32)
                       * (-math.log(10000.0) / D))
    ang = position * div_term                                # (max_len, D//2)
    pe = jnp.zeros((max_len, D), jnp.float32)
    pe = pe.at[:, 0::2].set(jnp.sin(ang))
    pe = pe.at[:, 1::2].set(jnp.cos(ang))
    pe = pe[:, None, :]                                      # (max_len, 1, D)
    return x + pe[:S]                                        # dropout identity in eval


if __name__ == "__main__":
    # Small config consistent with the module: x is (seq_len, batch, d_model).
    S, B, D = 8, 2, 32
    x = jax.random.normal(jax.random.PRNGKey(0), (S, B, D), dtype=jnp.float32)

    out = positional_encoding(x)
    jax.block_until_ready(out)
    ref = _reference(x)
    assert out.shape == (S, B, D)
    assert jnp.allclose(out, ref, atol=1e-5, rtol=1e-5), \
        float(jnp.max(jnp.abs(out - ref)))

    # Exercise multi-step grid, ragged last block, and lane-padding paths.
    S2, B2, D2 = 40, 3, 64
    x_big = jax.random.normal(jax.random.PRNGKey(1), (S2, B2, D2), dtype=jnp.float32)
    out_big = positional_encoding(x_big)
    jax.block_until_ready(out_big)
    assert jnp.allclose(out_big, _reference(x_big), atol=1e-5, rtol=1e-5), \
        float(jnp.max(jnp.abs(out_big - _reference(x_big))))

    print("KERNEL_OK")
</pallas_src>

<mosaic_0001>
module attributes {stable_mosaic.version = 11 : i64} {
  func.func @_add_pe_kernel(%arg0: i32, %arg1: memref<8x128xf32, #tpu.memory_space<vmem>>, %arg2: memref<8x32xf32, #tpu.memory_space<vmem>>, %arg3: memref<8x128xf32, #tpu.memory_space<vmem>>) attributes {dimension_semantics = [#tpu.dimension_semantics<parallel>], iteration_bounds = array<i64: 1>, scalar_prefetch = 0 : i64, scratch_operands = 0 : i64, tpu.core_type = #tpu.core_type<tc>, window_params = [{transform_indices = @transform_0, window_bounds = array<i64: 8, 128>}, {transform_indices = @transform_1, window_bounds = array<i64: 8, 32>}, {transform_indices = @transform_2, window_bounds = array<i64: 8, 128>}]} {
    %c0 = arith.constant 0 : index
    %c0_0 = arith.constant 0 : index
    %0 = vector.load %arg2[%c0, %c0_0] : memref<8x32xf32, #tpu.memory_space<vmem>>, vector<8x32xf32>
    %1 = tpu.concatenate %0, %0 in 1 : vector<8x32xf32>, vector<8x32xf32> -> vector<8x64xf32>
    %cst = arith.constant 0.000000e+00 : f32
    %2 = vector.broadcast %cst : f32 to vector<8x64xf32>
    %3 = tpu.concatenate %1, %2 in 1 : vector<8x64xf32>, vector<8x64xf32> -> vector<8x128xf32>
    %c0_1 = arith.constant 0 : index
    %c0_2 = arith.constant 0 : index
    %4 = vector.load %arg1[%c0_1, %c0_2] : memref<8x128xf32, #tpu.memory_space<vmem>>, vector<8x128xf32>
    %5 = arith.addf %4, %3 : vector<8x128xf32>
    %c0_3 = arith.constant 0 : index
    %c0_4 = arith.constant 0 : index
    %6 = vector.load %arg3[%c0_3, %c0_4] : memref<8x128xf32, #tpu.memory_space<vmem>>, vector<8x128xf32>
    tpu.vector_store %arg3[%c0_3, %c0_4], %5 {strides = array<i32>} : memref<8x128xf32, #tpu.memory_space<vmem>>, vector<8x128xf32>,
    return
  }
  func.func @transform_0(%arg0: i32) -> (i32, i32) {
    %c0_i32 = arith.constant 0 : i32
    %c0_i32_0 = arith.constant 0 : i32
    return %arg0, %c0_i32 : i32, i32
  }
  func.func @transform_1(%arg0: i32) -> (i32, i32) {
    %c0_i32 = arith.constant 0 : i32
    %c0_i32_0 = arith.constant 0 : i32
    return %arg0, %c0_i32 : i32, i32
  }
  func.func @transform_2(%arg0: i32) -> (i32, i32) {
    %c0_i32 = arith.constant 0 : i32
    %c0_i32_0 = arith.constant 0 : i32
    return %arg0, %c0_i32 : i32, i32
  }
}

</mosaic_0001>

<llo_original>
// kernel: tpu_custom_call.1
$region0: #{tpu_custom_call.1}
  #allocation0 [shape = 'u32[]', space=smem, size = 0x4, offset = 0x4, fixed_abs, tag = 'smem constant byte address 0x4 - core index']
  #allocation1 [shape = 'u32[144,128]{1,0:T(1,128)}', space=vmem, size = 0x12000, scoped, tag = 'internal scratch']
  %s0 = inlined_call_operand.hbm [shape: f32[8,128], index: 0, kind: input, shape index: {}]
  %s1 = inlined_call_operand.hbm [shape: f32[8,32], index: 1, kind: input, shape index: {}]
  %s2 = inlined_call_operand.hbm [shape: f32[8,128], index: 2, kind: output, shape index: {}]
  %s3 = sld [smem:[#allocation0]]
  $region26: #{tpu_custom_call.1} parent=0
    _
  %s5 = ssub.s32 1, %s3
  %s6 = scalar_select 0, %s5, %s3
  $region1: #{tpu_custom_call.1} parent=0
    #allocation2 [shape = 'u8[4096]{0}', space=vmem, size = 0x1000, scoped, tag = 'input window, operand 0, single buffered']
    #allocation3 [shape = 's32[1]{0}', space=sflag, size = 0x4, scoped, tag = 'scoped memory for tpu_custom_call.1']
    #allocation4 [shape = 's32[1]{0}', space=sflag, size = 0x4, scoped, tag = 'scoped memory for tpu_custom_call.1']
    #allocation5 [shape = 'u8[4096]{0}', space=vmem, size = 0x1000, scoped, tag = 'input window, operand 1, single buffered']
    #allocation6 [shape = 's32[1]{0}', space=sflag, size = 0x4, scoped, tag = 'scoped memory for tpu_custom_call.1']
    #allocation7 [shape = 'u8[4096]{0}', space=vmem, size = 0x1000, scoped, tag = 'output window, operand 0, single buffered']
    %7 = vsyncpa [#allocation3], 0
    %8 = vsyncpa [#allocation6], 0
    %9 = vsyncpa [#allocation4], 0
    // Predicated region
    $region2: #{tpu_custom_call.1} parent=1 // pred_check
      _
    $region3: #{tpu_custom_call.1} parent=1 // pred_check_branch
      %11 = sbr.rel (0) target = $region5
    $region4: #{tpu_custom_call.1} parent=1 // pred_region
      %s13 = ssub.s32 128, 128
      %14 = vsyncadd [#allocation3], %s13
      %s16 = sshll.u32 [#allocation2], 4
      %s17 = int_to_ptr.vmem [resolvable:$true] %s16
      %19 = dma.hbm_to_vmem [thread:$0]  %s0, 128, %s17, [#allocation3]
    $region5: #{tpu_custom_call.1} parent=1 // pred_fallthru
      _
    // Predicated region
    $region6: #{tpu_custom_call.1} parent=1 // pred_check
      _
    $region7: #{tpu_custom_call.1} parent=1 // pred_check_branch
      %21 = sbr.rel (0) target = $region9
    $region8: #{tpu_custom_call.1} parent=1 // pred_region
      %s23 = ssub.s32 128, 128
      %24 = vsyncadd [#allocation6], %s23
      %s26 = sshll.u32 [#allocation5], 4
      %s27 = int_to_ptr.vmem [resolvable:$true] %s26
      %29 = dma.hbm_to_vmem [thread:$0]  %s1, 128, %s27, [#allocation6]
    $region9: #{tpu_custom_call.1} parent=1 // pred_fallthru
      _
    // Predicated region
    $region10: #{tpu_custom_call.1} parent=1 // pred_check
      _
    $region11: #{tpu_custom_call.1} parent=1 // pred_check_branch
      %31 = sbr.rel (0) target = $region13
    $region12: #{tpu_custom_call.1} parent=1 // pred_region
      %32 = dma.done [#allocation3], 128
    $region13: #{tpu_custom_call.1} parent=1 // pred_fallthru
      _
    // Predicated region
    $region14: #{tpu_custom_call.1} parent=1 // pred_check
      _
    $region15: #{tpu_custom_call.1} parent=1 // pred_check_branch
      %34 = sbr.rel (0) target = $region17
    $region16: #{tpu_custom_call.1} parent=1 // pred_region
      %35 = dma.done [#allocation6], 128
    $region17: #{tpu_custom_call.1} parent=1 // pred_fallthru
      _
    %v36 = vld [vmem:[#allocation5] sm:$0xff]
    %38 = vrot.lane.b32.xlu0 %v36, 32
    %v39 = vpop.permute.xlu0 %38
    %vm41 = vcmask 261120
    %v42 = vsel %vm41, %v36, %v39
    %vm43 = vcmask 523264
    %v44 = vsel %vm43, %v42, 0.0
    %v45 = vld [vmem:[#allocation2] sm:$0xff]
    %v46 = vadd.f32 %v45, %v44
    %47 = vst [vmem:[#allocation7] sm:$0xff] %v46
    // Predicated region
    $region18: #{tpu_custom_call.1} parent=1 // pred_check
      _
    $region19: #{tpu_custom_call.1} parent=1 // pred_check_branch
      %49 = sbr.rel (0) target = $region21
    $region20: #{tpu_custom_call.1} parent=1 // pred_region
      %s51 = ssub.s32 128, 128
      %52 = vsyncadd [#allocation4], %s51
      %s54 = sshll.u32 [#allocation7], 4
      %s55 = int_to_ptr.vmem [resolvable:$true] %s54
      %57 = dma.vmem_to_hbm [thread:$0]  %s55, 128, %s2, [#allocation4]
    $region21: #{tpu_custom_call.1} parent=1 // pred_fallthru
      _
    // Predicated region
    $region22: #{tpu_custom_call.1} parent=1 // pred_check
      _
    $region23: #{tpu_custom_call.1} parent=1 // pred_check_branch
      %59 = sbr.rel (0) target = $region25
    $region24: #{tpu_custom_call.1} parent=1 // pred_region
      %60 = dma.done [#allocation4], 128
    $region25: #{tpu_custom_call.1} parent=1 // pred_fallthru
      _
    %61 = vsyncpa [#allocation3], 1
    %62 = vsyncpa [#allocation6], 1
    %63 = vsyncpa [#allocation4], 1

</llo_original>
